<compile_context>
chip_gen: v5e
topology: v5e:2x2
jax: 0.10.0
libtpu: 0.0.40
codegen_flags: <defaults>
</compile_context>

<pallas_src>
import jax
import jax.numpy as jnp
from jax.experimental import pallas as pl
from jax.experimental.pallas import tpu as pltpu


# ---------------------------------------------------------------------------
# Kernel: one grid step == one chunk of events
# ---------------------------------------------------------------------------
def _fused_nhp_kernel(x_ref, dt_ref, wx_ref, wh_ref, b_ref,
                      h0_ref, c0_ref, cbar0_ref,
                      out_ref,
                      h_s, c_s, cb_s, zx_s):
    """x_ref   : (TC*B, H)   event embeddings for this chunk (flattened)
       dt_ref  : (TC*B, 1)   delta-time to the next event
       wx_ref  : (H, GP)     x-path gate weights (7H cols padded to GP, gates reordered)
       wh_ref  : (H, GP)     h-path gate weights
       b_ref   : (1, GP)     gate bias
       h0/c0/cbar0 : (B, H)  initial state, consumed only at chunk 0
       out_ref : (TC*B, 4H)  packed [c | c_bar | delta | o] per event
       h_s/c_s/cb_s : (B, H) VMEM scratch carrying h(t^-), c(t^-), c_bar across chunks
       zx_s    : (TC*B, GP)  VMEM scratch holding the batched x-projection
    """
    B, H = h0_ref.shape
    rows, GP = zx_s.shape
    TC = rows // B                     # events in this chunk (static)

    @pl.when(pl.program_id(0) == 0)
    def _init():
        h_s[...] = h0_ref[...]
        c_s[...] = c0_ref[...]
        cb_s[...] = cbar0_ref[...]

    # ---- batched x-projection for the whole chunk: ONE big MXU matmul -------
    zx_s[...] = (jnp.dot(x_ref[...], wx_ref[...],
                         preferred_element_type=jnp.float32)
                 + b_ref[...])

    def step(t, carry):
        h, c, cb = carry
        off = pl.multiple_of(t * B, B)              # sublane-aligned row offset

        # serial part of the recurrence: h @ W_h
        z = zx_s[pl.ds(off, B), :] + jnp.dot(
            h, wh_ref[...], preferred_element_type=jnp.float32)

        # gate order after reordering: [i | ibar | f | fbar | o | z | delta]
        sig = jax.nn.sigmoid(z[:, 0:5 * H])         # one EUP pass over 5 gates
        i_i  = sig[:, 0 * H:1 * H]
        ib_i = sig[:, 1 * H:2 * H]
        f_i  = sig[:, 2 * H:3 * H]
        fb_i = sig[:, 3 * H:4 * H]
        o_i  = sig[:, 4 * H:5 * H]
        z_i  = jnp.tanh(z[:, 5 * H:6 * H])
        d_i  = jax.nn.softplus(z[:, 6 * H:7 * H])

        c_i  = f_i * c + i_i * z_i
        cb_i = fb_i * cb + ib_i * z_i

        # packed lane-dense per-event output row block: (B, 4H) -> one full store
        out_ref[pl.ds(off, B), :] = jnp.concatenate(
            [c_i, cb_i, d_i, o_i], axis=-1)

        # ContTimeLSTMCell.decay: evolve carried state to the next event time.
        dt = dt_ref[pl.ds(off, B), :]               # (B, 1), lane-broadcast below
        c_t = cb_i + (c_i - cb_i) * jnp.exp(-d_i * dt)
        h_t = o_i * jnp.tanh(c_t)
        return h_t, c_t, cb_i

    unroll = TC if TC <= 16 else 8
    h_f, c_f, cb_f = jax.lax.fori_loop(
        0, TC, step, (h_s[...], c_s[...], cb_s[...]), unroll=unroll)

    h_s[...] = h_f
    c_s[...] = c_f
    cb_s[...] = cb_f


# ---------------------------------------------------------------------------
# Parameter prep (hoisted, call ONCE at model init)
# ---------------------------------------------------------------------------
def prepare_params(weight, bias, hidden_dim):
    """weight: (7H, 2H) nn.Linear layout; bias: (7H,).

    Returns (w_x, w_h, b):
      - gates reordered to [i, ibar, f, fbar, o, z, delta] so the 5 sigmoid gates
        are a contiguous slab,
      - the concatenated 7H gate width padded once to a 128-lane multiple (GP),
      - split into x-path (first H rows of W^T) and h-path (last H rows).
    Padded lanes carry zero weights/bias and are never read in-kernel.
    """
    H = hidden_dim
    GP = ((7 * H + 127) // 128) * 128
    perm = jnp.array([0, 1, 2, 3, 5, 4, 6])         # [i,ibar,f,fbar,o,z,delta]
    w_t = jnp.asarray(weight, jnp.float32).T                       # (2H, 7H)
    w_r = w_t.reshape(2 * H, 7, H)[:, perm, :].reshape(2 * H, 7 * H)
    w_p = jnp.pad(w_r, ((0, 0), (0, GP - 7 * H)))
    b_r = jnp.asarray(bias, jnp.float32).reshape(7, H)[perm].reshape(7 * H)
    b_p = jnp.pad(b_r, (0, GP - 7 * H)).reshape(1, GP)
    return w_p[:H], w_p[H:], b_p                    # (H,GP), (H,GP), (1,GP)


# ---------------------------------------------------------------------------
# Wrappers
# ---------------------------------------------------------------------------
def _max_chunk_events(B, H, GP, vmem_budget_bytes=24 << 20):
    """Cap the events-per-chunk so streamed blocks + z_x scratch fit a conservative
    VMEM budget (sized for v7x's 64 MiB VMEM with headroom).  x/dt/out blocks are
    double-buffered by the pipeline; z_x scratch is single-buffered."""
    per_event = 4 * B * (2 * (H + 1 + 4 * H) + GP)
    chunk = vmem_budget_bytes // max(per_event, 1)
    return int(max(8, min(512, (chunk // 8) * 8)))


def cont_time_lstm_sequence_packed(x_seq, dt_seq, h0, c0, cbar0, w_x, w_h, b):
    """Fused forward + decay over a sequence of events, ONE pallas_call.

    x_seq: (T, B, H), dt_seq: (T, B), h0/c0/cbar0: (B, H).
    Returns packed (T, B, 4H) = [c | c_bar | delta | o] (preferred layout; avoids an
    extra HBM pass of wrapper-side splitting — see split_packed).
    """
    T, B, H = x_seq.shape
    GP = w_x.shape[1]
    max_chunk = _max_chunk_events(B, H, GP)

    if T <= max_chunk:
        TC, T_pad = T, T
    else:
        TC = max_chunk                               # multiple of 8
        T_pad = pl.cdiv(T, TC) * TC
    num_chunks = T_pad // TC
    if T_pad != T:                                   # zero-padded tail events are benign
        pad = T_pad - T
        x_seq = jnp.pad(x_seq, ((0, pad), (0, 0), (0, 0)))
        dt_seq = jnp.pad(dt_seq, ((0, pad), (0, 0)))

    x_flat = x_seq.reshape(T_pad * B, H).astype(jnp.float32)
    dt_flat = dt_seq.reshape(T_pad * B, 1).astype(jnp.float32)
    rows = TC * B

    const = lambda i: (0, 0)
    chunked = lambda i: (i, 0)

    packed = pl.pallas_call(
        _fused_nhp_kernel,
        out_shape=jax.ShapeDtypeStruct((T_pad * B, 4 * H), jnp.float32),
        grid=(num_chunks,),
        in_specs=[
            pl.BlockSpec((rows, H), chunked),        # x (flattened events)
            pl.BlockSpec((rows, 1), chunked),        # dt (lane-broadcast in-kernel)
            pl.BlockSpec((H, GP), const),            # w_x (resident)
            pl.BlockSpec((H, GP), const),            # w_h (resident)
            pl.BlockSpec((1, GP), const),            # bias (resident)
            pl.BlockSpec((B, H), const),             # h0
            pl.BlockSpec((B, H), const),             # c0
            pl.BlockSpec((B, H), const),             # c_bar0
        ],
        out_specs=pl.BlockSpec((rows, 4 * H), chunked),
        scratch_shapes=[pltpu.VMEM((B, H), jnp.float32)] * 3
                       + [pltpu.VMEM((rows, GP), jnp.float32)],
        compiler_params=pltpu.CompilerParams(
            dimension_semantics=("arbitrary",)),     # event axis is a recurrence
    )(x_flat, dt_flat, w_x, w_h, b,
      jnp.asarray(h0, jnp.float32), jnp.asarray(c0, jnp.float32),
      jnp.asarray(cbar0, jnp.float32))

    return packed[:T * B].reshape(T, B, 4 * H)


def split_packed(packed):
    H = packed.shape[-1] // 4
    return (packed[..., 0 * H:1 * H], packed[..., 1 * H:2 * H],
            packed[..., 2 * H:3 * H], packed[..., 3 * H:4 * H])


def cont_time_lstm_sequence(x_seq, dt_seq, h0, c0, cbar0, w_x, w_h, b):
    """Module-style API: returns (c_seq, c_bar_seq, delta_seq, o_seq), each (T,B,H)."""
    return split_packed(
        cont_time_lstm_sequence_packed(x_seq, dt_seq, h0, c0, cbar0, w_x, w_h, b))


def cont_time_lstm_cell(x_i, hidden_ti_minus, ct_ti_minus, c_bar_im1, w_x, w_h, b):
    """Single-step forward == ContTimeLSTMCell.forward (T=1 of the fused kernel)."""
    B, H = x_i.shape
    dt0 = jnp.zeros((1, B), jnp.float32)    # in-kernel decay of carried state is unused
    packed = cont_time_lstm_sequence_packed(
        x_i[None], dt0, hidden_ti_minus, ct_ti_minus, c_bar_im1, w_x, w_h, b)
    c, cb, d, o = split_packed(packed)
    return c[0], cb[0], d[0], o[0]


# ---------------------------------------------------------------------------
# Pure-JAX references (match the PyTorch module)
# ---------------------------------------------------------------------------
def _cell_reference(x, h, ct, cbar, weight, bias):
    z = jnp.concatenate([x, h], axis=1) @ weight.T + bias
    H = x.shape[1]
    i, ib, f, fb, zz, o, d = [z[:, k * H:(k + 1) * H] for k in range(7)]
    i, ib, f, fb, o = map(jax.nn.sigmoid, (i, ib, f, fb, o))
    zz = jnp.tanh(zz)
    d = jax.nn.softplus(d)
    return f * ct + i * zz, fb * cbar + ib * zz, d, o


def _decay_reference(c_i, cb_i, d_i, o_i, dt):
    c_t = cb_i + (c_i - cb_i) * jnp.exp(-d_i * dt)
    return c_t, o_i * jnp.tanh(c_t)


def _sequence_reference(x_seq, dt_seq, h0, c0, cbar0, weight, bias):
    T = x_seq.shape[0]
    h, c, cb = h0, c0, cbar0
    outs = []
    for t in range(T):
        c_i, cb_i, d_i, o_i = _cell_reference(x_seq[t], h, c, cb, weight, bias)
        outs.append((c_i, cb_i, d_i, o_i))
        c, h = _decay_reference(c_i, cb_i, d_i, o_i, dt_seq[t][:, None])
        cb = cb_i
    return tuple(jnp.stack(xs) for xs in zip(*outs))


# ---------------------------------------------------------------------------
if __name__ == "__main__":
    B, H, T = 8, 32, 16

    key = jax.random.PRNGKey(0)
    kx, kh, kc, kcb, kw, kb, kxs, kdt = jax.random.split(key, 8)

    # nn.Linear(2H, 7H): weight (7H, 2H), bias (7H,)
    bound = 1.0 / jnp.sqrt(2.0 * H)
    weight = jax.random.uniform(kw, (7 * H, 2 * H), jnp.float32, -bound, bound)
    bias = jax.random.uniform(kb, (7 * H,), jnp.float32, -bound, bound)

    # Hoisted once: transpose / gate-reorder / pad.
    w_x, w_h, b = prepare_params(weight, bias, H)

    # ---- single event: exact ContTimeLSTMCell.forward semantics ------------
    x_i   = jax.random.normal(kx,  (B, H), jnp.float32)
    h_tm  = jax.random.normal(kh,  (B, H), jnp.float32)
    ct_tm = jax.random.normal(kc,  (B, H), jnp.float32)
    c_bar = jax.random.normal(kcb, (B, H), jnp.float32)

    outs = jax.block_until_ready(
        cont_time_lstm_cell(x_i, h_tm, ct_tm, c_bar, w_x, w_h, b))
    refs = _cell_reference(x_i, h_tm, ct_tm, c_bar, weight, bias)
    for o, r in zip(outs, refs):
        assert o.shape == (B, H) and o.dtype == jnp.float32
        assert jnp.allclose(o, r, atol=1e-5, rtol=1e-5), float(jnp.max(jnp.abs(o - r)))

    # ---- fused event sequence (forward + decay per event, ONE pallas_call) -
    x_seq  = jax.random.normal(kxs, (T, B, H), jnp.float32)
    dt_seq = jax.random.uniform(kdt, (T, B), jnp.float32, 0.0, 1.0)

    seq_outs = jax.block_until_ready(
        cont_time_lstm_sequence(x_seq, dt_seq, h_tm, ct_tm, c_bar, w_x, w_h, b))
    seq_refs = _sequence_reference(x_seq, dt_seq, h_tm, ct_tm, c_bar, weight, bias)
    for o, r in zip(seq_outs, seq_refs):
        assert o.shape == (T, B, H) and o.dtype == jnp.float32
        assert jnp.allclose(o, r, atol=1e-4, rtol=1e-4), float(jnp.max(jnp.abs(o - r)))

    print("KERNEL_OK")
</pallas_src>

<mosaic_0001>
module attributes {stable_mosaic.version = 11 : i64} {
  func.func @_fused_nhp_kernel(%arg0: i32, %arg1: memref<8x32xf32, #tpu.memory_space<vmem>>, %arg2: memref<8x1xf32, #tpu.memory_space<vmem>>, %arg3: memref<32x256xf32, #tpu.memory_space<vmem>>, %arg4: memref<32x256xf32, #tpu.memory_space<vmem>>, %arg5: memref<1x256xf32, #tpu.memory_space<vmem>>, %arg6: memref<8x32xf32, #tpu.memory_space<vmem>>, %arg7: memref<8x32xf32, #tpu.memory_space<vmem>>, %arg8: memref<8x32xf32, #tpu.memory_space<vmem>>, %arg9: memref<8x128xf32, #tpu.memory_space<vmem>>, %arg10: memref<8x32xf32, #tpu.memory_space<vmem>>, %arg11: memref<8x32xf32, #tpu.memory_space<vmem>>, %arg12: memref<8x32xf32, #tpu.memory_space<vmem>>, %arg13: memref<8x256xf32, #tpu.memory_space<vmem>>) attributes {dimension_semantics = [#tpu.dimension_semantics<arbitrary>], iteration_bounds = array<i64: 1>, scalar_prefetch = 0 : i64, scratch_operands = 4 : i64, tpu.core_type = #tpu.core_type<tc>, window_params = [{transform_indices = @transform_0, window_bounds = array<i64: 8, 32>}, {transform_indices = @transform_1, window_bounds = array<i64: 8, 1>}, {pipeline_mode = #tpu.pipeline_mode<synchronous>, transform_indices = @transform_2, window_bounds = array<i64: 32, 256>}, {pipeline_mode = #tpu.pipeline_mode<synchronous>, transform_indices = @transform_3, window_bounds = array<i64: 32, 256>}, {pipeline_mode = #tpu.pipeline_mode<synchronous>, transform_indices = @transform_4, window_bounds = array<i64: 1, 256>}, {pipeline_mode = #tpu.pipeline_mode<synchronous>, transform_indices = @transform_5, window_bounds = array<i64: 8, 32>}, {pipeline_mode = #tpu.pipeline_mode<synchronous>, transform_indices = @transform_6, window_bounds = array<i64: 8, 32>}, {pipeline_mode = #tpu.pipeline_mode<synchronous>, transform_indices = @transform_7, window_bounds = array<i64: 8, 32>}, {transform_indices = @transform_8, window_bounds = array<i64: 8, 128>}]} {
    %c0_i32 = arith.constant 0 : i32
    %0 = arith.cmpi eq, %arg0, %c0_i32 : i32
    %1 = arith.extui %0 : i1 to i32
    %c0_i32_0 = arith.constant 0 : i32
    %2 = arith.cmpi ne, %1, %c0_i32_0 : i32
    scf.if %2 {
      %c0_31 = arith.constant 0 : index
      %c0_32 = arith.constant 0 : index
      %72 = vector.load %arg6[%c0_31, %c0_32] : memref<8x32xf32, #tpu.memory_space<vmem>>, vector<8x32xf32>
      %c0_33 = arith.constant 0 : index
      %c0_34 = arith.constant 0 : index
      %73 = vector.load %arg10[%c0_33, %c0_34] : memref<8x32xf32, #tpu.memory_space<vmem>>, vector<8x32xf32>
      tpu.vector_store %arg10[%c0_33, %c0_34], %72 {strides = array<i32>} : memref<8x32xf32, #tpu.memory_space<vmem>>, vector<8x32xf32>,
      %c0_35 = arith.constant 0 : index
      %c0_36 = arith.constant 0 : index
      %74 = vector.load %arg7[%c0_35, %c0_36] : memref<8x32xf32, #tpu.memory_space<vmem>>, vector<8x32xf32>
      %c0_37 = arith.constant 0 : index
      %c0_38 = arith.constant 0 : index
      %75 = vector.load %arg11[%c0_37, %c0_38] : memref<8x32xf32, #tpu.memory_space<vmem>>, vector<8x32xf32>
      tpu.vector_store %arg11[%c0_37, %c0_38], %74 {strides = array<i32>} : memref<8x32xf32, #tpu.memory_space<vmem>>, vector<8x32xf32>,
      %c0_39 = arith.constant 0 : index
      %c0_40 = arith.constant 0 : index
      %76 = vector.load %arg8[%c0_39, %c0_40] : memref<8x32xf32, #tpu.memory_space<vmem>>, vector<8x32xf32>
      %c0_41 = arith.constant 0 : index
      %c0_42 = arith.constant 0 : index
      %77 = vector.load %arg12[%c0_41, %c0_42] : memref<8x32xf32, #tpu.memory_space<vmem>>, vector<8x32xf32>
      tpu.vector_store %arg12[%c0_41, %c0_42], %76 {strides = array<i32>} : memref<8x32xf32, #tpu.memory_space<vmem>>, vector<8x32xf32>,
    } else {
    }
    %c0 = arith.constant 0 : index
    %c0_1 = arith.constant 0 : index
    %3 = vector.load %arg1[%c0, %c0_1] : memref<8x32xf32, #tpu.memory_space<vmem>>, vector<8x32xf32>
    %c0_2 = arith.constant 0 : index
    %c0_3 = arith.constant 0 : index
    %4 = vector.load %arg3[%c0_2, %c0_3] : memref<32x256xf32, #tpu.memory_space<vmem>>, vector<32x256xf32>
    %cst = arith.constant dense<0.000000e+00> : vector<8x256xf32>
    %5 = tpu.matmul %3, %4, %cst {dimension_numbers = #tpu.dot_dimension_numbers<[1], [0], [0], [1], [0, 0, 1, 1], [], []>} : vector<8x32xf32>, vector<32x256xf32>, vector<8x256xf32> -> vector<8x256xf32>
    %c0_4 = arith.constant 0 : index
    %c0_5 = arith.constant 0 : index
    %6 = vector.load %arg5[%c0_4, %c0_5] : memref<1x256xf32, #tpu.memory_space<vmem>>, vector<1x256xf32>
    %7 = vector.broadcast %6 : vector<1x256xf32> to vector<8x256xf32>
    %8 = arith.addf %5, %7 : vector<8x256xf32>
    %c0_6 = arith.constant 0 : index
    %c0_7 = arith.constant 0 : index
    %9 = vector.load %arg13[%c0_6, %c0_7] : memref<8x256xf32, #tpu.memory_space<vmem>>, vector<8x256xf32>
    tpu.vector_store %arg13[%c0_6, %c0_7], %8 {strides = array<i32>} : memref<8x256xf32, #tpu.memory_space<vmem>>, vector<8x256xf32>,
    %c0_8 = arith.constant 0 : index
    %c0_9 = arith.constant 0 : index
    %10 = vector.load %arg10[%c0_8, %c0_9] : memref<8x32xf32, #tpu.memory_space<vmem>>, vector<8x32xf32>
    %c0_10 = arith.constant 0 : index
    %c0_11 = arith.constant 0 : index
    %11 = vector.load %arg11[%c0_10, %c0_11] : memref<8x32xf32, #tpu.memory_space<vmem>>, vector<8x32xf32>
    %c0_12 = arith.constant 0 : index
    %c0_13 = arith.constant 0 : index
    %12 = vector.load %arg12[%c0_12, %c0_13] : memref<8x32xf32, #tpu.memory_space<vmem>>, vector<8x32xf32>
    %c0_i32_14 = arith.constant 0 : i32
    %c8_i32 = arith.constant 8 : i32
    %13 = arith.muli %c0_i32_14, %c8_i32 : i32
    %14 = tpu.assume_multiple %13, 8 : i32
    %15 = arith.index_cast %14 : i32 to index
    %c0_15 = arith.constant 0 : index
    %16 = vector.load %arg13[%15, %c0_15] : memref<8x256xf32, #tpu.memory_space<vmem>>, vector<8x256xf32>
    %c0_16 = arith.constant 0 : index
    %c0_17 = arith.constant 0 : index
    %17 = vector.load %arg4[%c0_16, %c0_17] : memref<32x256xf32, #tpu.memory_space<vmem>>, vector<32x256xf32>
    %cst_18 = arith.constant dense<0.000000e+00> : vector<8x256xf32>
    %18 = tpu.matmul %10, %17, %cst_18 {dimension_numbers = #tpu.dot_dimension_numbers<[1], [0], [0], [1], [0, 0, 1, 1], [], []>} : vector<8x32xf32>, vector<32x256xf32>, vector<8x256xf32> -> vector<8x256xf32>
    %19 = arith.addf %16, %18 : vector<8x256xf32>
    %20 = vector.extract_strided_slice %19 {offsets = [0, 0], sizes = [8, 160], strides = [1, 1]} : vector<8x256xf32> to vector<8x160xf32>
    %21 = arith.negf %20 : vector<8x160xf32>
    %22 = math.exp %21 : vector<8x160xf32>
    %cst_19 = arith.constant 1.000000e+00 : f32
    %23 = vector.broadcast %cst_19 : f32 to vector<8x160xf32>
    %24 = arith.addf %23, %22 : vector<8x160xf32>
    %25 = arith.divf %23, %24 : vector<8x160xf32>
    %26 = vector.extract_strided_slice %25 {offsets = [0, 0], sizes = [8, 32], strides = [1, 1]} : vector<8x160xf32> to vector<8x32xf32>
    %27 = vector.extract_strided_slice %25 {offsets = [0, 32], sizes = [8, 32], strides = [1, 1]} : vector<8x160xf32> to vector<8x32xf32>
    %28 = vector.extract_strided_slice %25 {offsets = [0, 64], sizes = [8, 32], strides = [1, 1]} : vector<8x160xf32> to vector<8x32xf32>
    %29 = vector.extract_strided_slice %25 {offsets = [0, 96], sizes = [8, 32], strides = [1, 1]} : vector<8x160xf32> to vector<8x32xf32>
    %30 = vector.extract_strided_slice %25 {offsets = [0, 128], sizes = [8, 32], strides = [1, 1]} : vector<8x160xf32> to vector<8x32xf32>
    %31 = vector.extract_strided_slice %19 {offsets = [0, 160], sizes = [8, 32], strides = [1, 1]} : vector<8x256xf32> to vector<8x32xf32>
    %32 = math.tanh %31 : vector<8x32xf32>
    %33 = vector.extract_strided_slice %19 {offsets = [0, 192], sizes = [8, 32], strides = [1, 1]} : vector<8x256xf32> to vector<8x32xf32>
    %cst_20 = arith.constant 0.000000e+00 : f32
    %34 = vector.broadcast %cst_20 : f32 to vector<8x32xf32>
    %35 = arith.maximumf %33, %34 : vector<8x32xf32>
    %36 = vector.broadcast %cst_20 : f32 to vector<8x32xf32>
    %37 = arith.subf %33, %36 : vector<8x32xf32>
    %38 = arith.cmpf one, %37, %37 : vector<8x32xf32>
    %39 = vector.broadcast %cst_20 : f32 to vector<8x32xf32>
    %40 = arith.addf %33, %39 : vector<8x32xf32>
    %41 = math.absf %37 : vector<8x32xf32>
    %cst_21 = arith.constant 0.000000e+00 : f32
    %42 = vector.broadcast %cst_21 : f32 to vector<8x32xf32>
    %43 = arith.subf %42, %41 : vector<8x32xf32>
    %44 = math.exp %43 : vector<8x32xf32>
    %45 = math.log1p %44 : vector<8x32xf32>
    %46 = arith.addf %35, %45 : vector<8x32xf32>
    %47 = arith.select %38, %40, %46 : vector<8x32xi1>, vector<8x32xf32>
    %48 = arith.mulf %28, %11 : vector<8x32xf32>
    %49 = arith.mulf %26, %32 : vector<8x32xf32>
    %50 = arith.addf %48, %49 : vector<8x32xf32>
    %51 = arith.mulf %29, %12 : vector<8x32xf32>
    %52 = arith.mulf %27, %32 : vector<8x32xf32>
    %53 = arith.addf %51, %52 : vector<8x32xf32>
    %54 = tpu.concatenate %50, %53, %47, %30 in 1 : vector<8x32xf32>, vector<8x32xf32>, vector<8x32xf32>, vector<8x32xf32> -> vector<8x128xf32>
    %55 = arith.index_cast %14 : i32 to index
    %c0_22 = arith.constant 0 : index
    %56 = vector.load %arg9[%55, %c0_22] : memref<8x128xf32, #tpu.memory_space<vmem>>, vector<8x128xf32>
    tpu.vector_store %arg9[%55, %c0_22], %54 {strides = array<i32>} : memref<8x128xf32, #tpu.memory_space<vmem>>, vector<8x128xf32>,
    %57 = arith.index_cast %14 : i32 to index
    %c0_23 = arith.constant 0 : index
    %58 = vector.load %arg2[%57, %c0_23] : memref<8x1xf32, #tpu.memory_space<vmem>>, vector<8x1xf32>
    %59 = arith.subf %50, %53 : vector<8x32xf32>
    %cst_24 = arith.constant 0.000000e+00 : f32
    %60 = vector.broadcast %cst_24 : f32 to vector<8x32xf32>
    %61 = arith.subf %60, %47 : vector<8x32xf32>
    %62 = vector.broadcast %58 : vector<8x1xf32> to vector<8x32xf32>
    %63 = arith.mulf %61, %62 : vector<8x32xf32>
    %64 = math.exp %63 : vector<8x32xf32>
    %65 = arith.mulf %59, %64 : vector<8x32xf32>
    %66 = arith.addf %53, %65 : vector<8x32xf32>
    %67 = math.tanh %66 : vector<8x32xf32>
    %68 = arith.mulf %30, %67 : vector<8x32xf32>
    %c1_i32 = arith.constant 1 : i32
    %c0_25 = arith.constant 0 : index
    %c0_26 = arith.constant 0 : index
    %69 = vector.load %arg10[%c0_25, %c0_26] : memref<8x32xf32, #tpu.memory_space<vmem>>, vector<8x32xf32>
    tpu.vector_store %arg10[%c0_25, %c0_26], %68 {strides = array<i32>} : memref<8x32xf32, #tpu.memory_space<vmem>>, vector<8x32xf32>,
    %c0_27 = arith.constant 0 : index
    %c0_28 = arith.constant 0 : index
    %70 = vector.load %arg11[%c0_27, %c0_28] : memref<8x32xf32, #tpu.memory_space<vmem>>, vector<8x32xf32>
    tpu.vector_store %arg11[%c0_27, %c0_28], %66 {strides = array<i32>} : memref<8x32xf32, #tpu.memory_space<vmem>>, vector<8x32xf32>,
    %c0_29 = arith.constant 0 : index
    %c0_30 = arith.constant 0 : index
    %71 = vector.load %arg12[%c0_29, %c0_30] : memref<8x32xf32, #tpu.memory_space<vmem>>, vector<8x32xf32>
    tpu.vector_store %arg12[%c0_29, %c0_30], %53 {strides = array<i32>} : memref<8x32xf32, #tpu.memory_space<vmem>>, vector<8x32xf32>,
    return
  }
  func.func @transform_0(%arg0: i32) -> (i32, i32) {
    %c0_i32 = arith.constant 0 : i32
    %c0_i32_0 = arith.constant 0 : i32
    return %arg0, %c0_i32 : i32, i32
  }
  func.func @transform_1(%arg0: i32) -> (i32, i32) {
    %c0_i32 = arith.constant 0 : i32
    %c0_i32_0 = arith.constant 0 : i32
    return %arg0, %c0_i32 : i32, i32
  }
  func.func @transform_2(%arg0: i32) -> (i32, i32) {
    %c0_i32 = arith.constant 0 : i32
    %c0_i32_0 = arith.constant 0 : i32
    %c0_i32_1 = arith.constant 0 : i32
    return %c0_i32, %c0_i32_0 : i32, i32
  }
  func.func @transform_3(%arg0: i32) -> (i32, i32) {
    %c0_i32 = arith.constant 0 : i32
    %c0_i32_0 = arith.constant 0 : i32
    %c0_i32_1 = arith.constant 0 : i32
    return %c0_i32, %c0_i32_0 : i32, i32
  }
  func.func @transform_4(%arg0: i32) -> (i32, i32) {
    %c0_i32 = arith.constant 0 : i32
    %c0_i32_0 = arith.constant 0 : i32
    %c0_i32_1 = arith.constant 0 : i32
    return %c0_i32, %c0_i32_0 : i32, i32
  }
  func.func @transform_5(%arg0: i32) -> (i32, i32) {
    %c0_i32 = arith.constant 0 : i32
    %c0_i32_0 = arith.constant 0 : i32
    %c0_i32_1 = arith.constant 0 : i32
    return %c0_i32, %c0_i32_0 : i32, i32
  }
  func.func @transform_6(%arg0: i32) -> (i32, i32) {
    %c0_i32 = arith.constant 0 : i32
    %c0_i32_0 = arith.constant 0 : i32
    %c0_i32_1 = arith.constant 0 : i32
    return %c0_i32, %c0_i32_0 : i32, i32
  }
  func.func @transform_7(%arg0: i32) -> (i32, i32) {
    %c0_i32 = arith.constant 0 : i32
    %c0_i32_0 = arith.constant 0 : i32
    %c0_i32_1 = arith.constant 0 : i32
    return %c0_i32, %c0_i32_0 : i32, i32
  }
  func.func @transform_8(%arg0: i32) -> (i32, i32) {
    %c0_i32 = arith.constant 0 : i32
    %c0_i32_0 = arith.constant 0 : i32
    return %arg0, %c0_i32 : i32, i32
  }
}

</mosaic_0001>

<llo_original>
// kernel: tpu_custom_call.1
$region0: #{tpu_custom_call.1}
  #allocation0 [shape = 'u32[]', space=smem, size = 0x4, offset = 0x4, fixed_abs, tag = 'smem constant byte address 0x4 - core index']
  #allocation1 [shape = 'u32[72,128]{1,0:T(1,128)}', space=vmem, size = 0x9000, scoped, tag = 'internal scratch']
  #allocation2 [shape = 'f32[8,32]{1,0:T(8,128)}', space=vmem, size = 0x1000, scoped, tag = 'scratch operand']
  #allocation3 [shape = 'f32[8,32]{1,0:T(8,128)}', space=vmem, size = 0x1000, scoped, tag = 'scratch operand']
  #allocation4 [shape = 'f32[8,32]{1,0:T(8,128)}', space=vmem, size = 0x1000, scoped, tag = 'scratch operand']
  #allocation5 [shape = 'f32[8,256]{1,0:T(8,128)}', space=vmem, size = 0x2000, scoped, tag = 'scratch operand']
  %s0 = inlined_call_operand.vmem [shape: f32[8,32], index: 0, kind: input, shape index: {}]
  %s1 = inlined_call_operand.vmem [shape: f32[8,1], index: 1, kind: input, shape index: {}]
  %s2 = inlined_call_operand.hbm [shape: f32[32,256], index: 2, kind: input, shape index: {}]
  %s3 = inlined_call_operand.hbm [shape: f32[32,256], index: 3, kind: input, shape index: {}]
  %s4 = inlined_call_operand.vmem [shape: f32[1,256], index: 4, kind: input, shape index: {}]
  %s5 = inlined_call_operand.hbm [shape: f32[8,32], index: 5, kind: input, shape index: {}]
  %s6 = inlined_call_operand.hbm [shape: f32[8,32], index: 6, kind: input, shape index: {}]
  %s7 = inlined_call_operand.hbm [shape: f32[8,32], index: 7, kind: input, shape index: {}]
  %s8 = inlined_call_operand.hbm [shape: f32[8,128], index: 8, kind: output, shape index: {}]
  %s9 = sld [smem:[#allocation0]]
  $region66: #{tpu_custom_call.1} parent=0
    _
  %s11 = ssub.s32 1, %s9
  %s12 = scalar_select 0, %s11, %s9
  $region1: #{tpu_custom_call.1} parent=0
    #allocation6 [shape = 'u8[32768]{0}', space=vmem, size = 0x8000, scoped, tag = 'input window, operand 2, single buffered']
    #allocation7 [shape = 's32[1]{0}', space=sflag, size = 0x4, scoped, tag = 'scoped memory for tpu_custom_call.1']
    #allocation8 [shape = 's32[1]{0}', space=sflag, size = 0x4, scoped, tag = 'scoped memory for tpu_custom_call.1']
    #allocation9 [shape = 'u8[32768]{0}', space=vmem, size = 0x8000, scoped, tag = 'input window, operand 3, single buffered']
    #allocation10 [shape = 's32[1]{0}', space=sflag, size = 0x4, scoped, tag = 'scoped memory for tpu_custom_call.1']
    #allocation11 [shape = 'u8[4096]{0}', space=vmem, size = 0x1000, scoped, tag = 'input window, operand 5, single buffered']
    #allocation12 [shape = 'u8[4096]{0}', space=vmem, size = 0x1000, scoped, tag = 'input window, operand 6, single buffered']
    #allocation13 [shape = 's32[1]{0}', space=sflag, size = 0x4, scoped, tag = 'scoped memory for tpu_custom_call.1']
    #allocation14 [shape = 'u8[4096]{0}', space=vmem, size = 0x1000, scoped, tag = 'input window, operand 7, single buffered']
    #allocation15 [shape = 'u8[4096]{0}', space=vmem, size = 0x1000, scoped, tag = 'output window, operand 0, single buffered']
    %13 = vsyncpa [#allocation7], 0
    %14 = vsyncpa [#allocation10], 0
    %15 = vsyncpa [#allocation13], 0
    %16 = vsyncpa [#allocation8], 0
    // Predicated region
    $region2: #{tpu_custom_call.1} parent=1 // pred_check
      _
    $region3: #{tpu_custom_call.1} parent=1 // pred_check_branch
      %18 = sbr.rel (0) target = $region5
    $region4: #{tpu_custom_call.1} parent=1 // pred_region
      _
    $region5: #{tpu_custom_call.1} parent=1 // pred_fallthru
      _
    // Predicated region
    $region6: #{tpu_custom_call.1} parent=1 // pred_check
      _
    $region7: #{tpu_custom_call.1} parent=1 // pred_check_branch
      %20 = sbr.rel (0) target = $region9
    $region8: #{tpu_custom_call.1} parent=1 // pred_region
      _
    $region9: #{tpu_custom_call.1} parent=1 // pred_fallthru
      _
    // Predicated region
    $region10: #{tpu_custom_call.1} parent=1 // pred_check
      _
    $region11: #{tpu_custom_call.1} parent=1 // pred_check_branch
      %22 = sbr.rel (0) target = $region13
    $region12: #{tpu_custom_call.1} parent=1 // pred_region
      %24 = vsyncadd [#allocation7], 0
      %s25 = sshll.u32 %s2, 4
      %s26 = int_to_ptr.hbm [resolvable:$true] %s25
      %s27 = sshll.u32 [#allocation6], 4
      %s28 = int_to_ptr.vmem [resolvable:$true] %s27
      %33 = dma.hbm_to_vmem [thread:$0]  %s26, 1024, %s28, [#allocation7], 256, 256, 16
    $region13: #{tpu_custom_call.1} parent=1 // pred_fallthru
      _
    // Predicated region
    $region14: #{tpu_custom_call.1} parent=1 // pred_check
      _
    $region15: #{tpu_custom_call.1} parent=1 // pred_check_branch
      %35 = sbr.rel (0) target = $region17
    $region16: #{tpu_custom_call.1} parent=1 // pred_region
      %37 = vsyncadd [#allocation10], 0
      %s38 = sshll.u32 %s3, 4
      %s39 = int_to_ptr.hbm [resolvable:$true] %s38
      %s40 = sshll.u32 [#allocation9], 4
      %s41 = int_to_ptr.vmem [resolvable:$true] %s40
      %46 = dma.hbm_to_vmem [thread:$0]  %s39, 1024, %s41, [#allocation10], 256, 256, 16
    $region17: #{tpu_custom_call.1} parent=1 // pred_fallthru
      _
    // Predicated region
    $region18: #{tpu_custom_call.1} parent=1 // pred_check
      _
    $region19: #{tpu_custom_call.1} parent=1 // pred_check_branch
      %48 = sbr.rel (0) target = $region21
    $region20: #{tpu_custom_call.1} parent=1 // pred_region
      _
    $region21: #{tpu_custom_call.1} parent=1 // pred_fallthru
      _
    // Predicated region
    $region22: #{tpu_custom_call.1} parent=1 // pred_check
      _
    $region23: #{tpu_custom_call.1} parent=1 // pred_check_branch
      %50 = sbr.rel (0) target = $region25
    $region24: #{tpu_custom_call.1} parent=1 // pred_region
      %52 = vsyncadd [#allocation10], 0
      %s54 = sshll.u32 %s5, 4
      %s55 = int_to_ptr.hbm [resolvable:$true] %s54
      %s56 = sshll.u32 [#allocation11], 4
      %s57 = int_to_ptr.vmem [resolvable:$true] %s56
      %59 = dma.hbm_to_vmem [thread:$0]  %s55, 128, %s57, [#allocation10]
    $region25: #{tpu_custom_call.1} parent=1 // pred_fallthru
      _
    // Predicated region
    $region26: #{tpu_custom_call.1} parent=1 // pred_check
      _
    $region27: #{tpu_custom_call.1} parent=1 // pred_check_branch
      %61 = sbr.rel (0) target = $region29
    $region28: #{tpu_custom_call.1} parent=1 // pred_region
      %63 = vsyncadd [#allocation13], 0
      %s65 = sshll.u32 %s6, 4
      %s66 = int_to_ptr.hbm [resolvable:$true] %s65
      %s67 = sshll.u32 [#allocation12], 4
      %s68 = int_to_ptr.vmem [resolvable:$true] %s67
      %70 = dma.hbm_to_vmem [thread:$0]  %s66, 128, %s68, [#allocation13]
    $region29: #{tpu_custom_call.1} parent=1 // pred_fallthru
      _
    // Predicated region
    $region30: #{tpu_custom_call.1} parent=1 // pred_check
      _
    $region31: #{tpu_custom_call.1} parent=1 // pred_check_branch
      %72 = sbr.rel (0) target = $region33
    $region32: #{tpu_custom_call.1} parent=1 // pred_region
      %74 = vsyncadd [#allocation13], 0
      %s76 = sshll.u32 %s7, 4
      %s77 = int_to_ptr.hbm [resolvable:$true] %s76
      %s78 = sshll.u32 [#allocation14], 4
      %s79 = int_to_ptr.vmem [resolvable:$true] %s78
      %81 = dma.hbm_to_vmem [thread:$0]  %s77, 128, %s79, [#allocation13]
    $region33: #{tpu_custom_call.1} parent=1 // pred_fallthru
      _
    // Predicated region
    $region34: #{tpu_custom_call.1} parent=1 // pred_check
      _
    $region35: #{tpu_custom_call.1} parent=1 // pred_check_branch
      %83 = sbr.rel (0) target = $region37
    $region36: #{tpu_custom_call.1} parent=1 // pred_region
      %85 = dma.done [#allocation7], 1024
    $region37: #{tpu_custom_call.1} parent=1 // pred_fallthru
      _
    // Predicated region
    $region38: #{tpu_custom_call.1} parent=1 // pred_check
      _
    $region39: #{tpu_custom_call.1} parent=1 // pred_check_branch
      %87 = sbr.rel (0) target = $region41
    $region40: #{tpu_custom_call.1} parent=1 // pred_region
      %89 = dma.done [#allocation10], 1024
    $region41: #{tpu_custom_call.1} parent=1 // pred_fallthru
      _
    // Predicated region
    $region42: #{tpu_custom_call.1} parent=1 // pred_check
      _
    $region43: #{tpu_custom_call.1} parent=1 // pred_check_branch
      %91 = sbr.rel (0) target = $region45
    $region44: #{tpu_custom_call.1} parent=1 // pred_region
      %93 = dma.done [#allocation10], 128
    $region45: #{tpu_custom_call.1} parent=1 // pred_fallthru
      _
    // Predicated region
    $region46: #{tpu_custom_call.1} parent=1 // pred_check
      _
    $region47: #{tpu_custom_call.1} parent=1 // pred_check_branch
      %95 = sbr.rel (0) target = $region49
    $region48: #{tpu_custom_call.1} parent=1 // pred_region
      %97 = dma.done [#allocation13], 128
    $region49: #{tpu_custom_call.1} parent=1 // pred_fallthru
      _
    // Predicated region
    $region50: #{tpu_custom_call.1} parent=1 // pred_check
      _
    $region51: #{tpu_custom_call.1} parent=1 // pred_check_branch
      %99 = sbr.rel (0) target = $region53
    $region52: #{tpu_custom_call.1} parent=1 // pred_region
      %101 = dma.done [#allocation13], 128
    $region53: #{tpu_custom_call.1} parent=1 // pred_fallthru
      _
    %p102 = scmp.eq.s32.totalorder 0, 0
    // Predicated region
    $region54: #{tpu_custom_call.1} parent=1 // pred_check
      %p103 = pneg %p102
    $region55: #{tpu_custom_call.1} parent=1 // pred_check_branch
      %105 = sbr.rel (%p103) target = $region57
    $region56: #{tpu_custom_call.1} parent=1 // pred_region
      %v106 = vld [vmem:[#allocation11] sm:$0xff]
      %vm107 = vcmask 261120
      %108 = vst.msk [vmem:[#allocation2] sm:$0xff] %vm107, %v106
      %v109 = vld [vmem:[#allocation12] sm:$0xff]
      %110 = vst.msk [vmem:[#allocation3] sm:$0xff] %vm107, %v109
      %v111 = vld [vmem:[#allocation14] sm:$0xff]
      %112 = vst.msk [vmem:[#allocation4] sm:$0xff] %vm107, %v111
    $region57: #{tpu_custom_call.1} parent=1 // pred_fallthru
      _
    %v113 = vld [vmem:[%s0] sm:$0xff]
    %v114 = vld [vmem:[#allocation6] sm:$0xff]
    %v115 = vld [vmem:[#allocation6 + $0x8] sm:$0xff]
    %v116 = vld [vmem:[#allocation6 + $0x10] sm:$0xff]
    %v117 = vld [vmem:[#allocation6 + $0x18] sm:$0xff]
    %v118 = vld [vmem:[#allocation6 + $0x20] sm:$0xff]
    %v119 = vld [vmem:[#allocation6 + $0x28] sm:$0xff]
    %v120 = vld [vmem:[#allocation6 + $0x30] sm:$0xff]
    %v121 = vld [vmem:[#allocation6 + $0x38] sm:$0xff]
    %v122 = vld [vmem:[%s4] sm:$0x3]
    %v124 = vperm.slane %v122, 0
    %v125 = vperm.slane %v122, 1
    %vm128 = vcmask 261120
    %v130 = vsel %vm128, %v113, 0
    %132 = vmatpush.msra.mxu0 0.0
    %133 = vmatpush.msra.mxu0 0.0
    %134 = vmatpush.msra.mxu0 0.0
    %135 = vmatpush.msra.mxu0 0.0
    %136 = vmatpush.msra.mxu0 0.0
    %137 = vmatpush.msra.mxu0 0.0
    %138 = vmatpush.msra.mxu0 0.0
    %139 = vmatpush.msra.mxu0 0.0
    %140 = vmatpush.msra.mxu0 0.0
    %141 = vmatpush.msra.mxu0 0.0
    %142 = vmatpush.msra.mxu0 0.0
    %143 = vmatpush.msra.mxu0 0.0
    %144 = vmatpush.msra.mxu0 %v120
    %145 = vmatpush.msra.mxu0 %v118
    %146 = vmatpush.msra.mxu0 %v116
    %147 = vmatpush.msra.mxu0 %v114
    %148 = vmatmul.f32.gmra.mxu0 %v130
    %v149 = vpop.f32.mrf.mxu0
    %v150 = vadd.f32 %v124, %v149
    %151 = vdwg.mxu0
    %152 = vmatpush.msra.mxu0 0.0
    %153 = vmatpush.msra.mxu0 0.0
    %154 = vmatpush.msra.mxu0 0.0
    %155 = vmatpush.msra.mxu0 0.0
    %156 = vmatpush.msra.mxu0 0.0
    %157 = vmatpush.msra.mxu0 0.0
    %158 = vmatpush.msra.mxu0 0.0
    %159 = vmatpush.msra.mxu0 0.0
    %160 = vmatpush.msra.mxu0 0.0
    %161 = vmatpush.msra.mxu0 0.0
    %162 = vmatpush.msra.mxu0 0.0
    %163 = vmatpush.msra.mxu0 0.0
    %164 = vmatpush.msra.mxu0 %v121
    %165 = vmatpush.msra.mxu0 %v119
    %166 = vmatpush.msra.mxu0 %v117
    %167 = vmatpush.msra.mxu0 %v115
    %168 = vmatmul.f32.gmra.mxu0 %v130
    %v169 = vpop.f32.mrf.mxu0
    %v170 = vadd.f32 %v125, %v169
    %171 = vdwg.mxu0
    %172 = vst [vmem:[#allocation5] sm:$0xff] %v150
    %173 = vst [vmem:[#allocation5 + $0x8] sm:$0xff] %v170
    %v174 = vld [vmem:[#allocation2] sm:$0xff]
    %v175 = vld [vmem:[#allocation3] sm:$0xff]
    %v176 = vld [vmem:[#allocation4] sm:$0xff]
    %s177 = smul.u32 0, 2
    %s178 = smul.addr %s177, 8
    %s179 = scalar_lea.vmem [#allocation5], %s178
    %v180 = vld [vmem:[%s179] sm:$0xff]
    %v181 = vld [vmem:[%s179 + $0x8] sm:$0xff]
    %v182 = vld [vmem:[#allocation9] sm:$0xff]
    %v183 = vld [vmem:[#allocation9 + $0x8] sm:$0xff]
    %v184 = vld [vmem:[#allocation9 + $0x10] sm:$0xff]
    %v185 = vld [vmem:[#allocation9 + $0x18] sm:$0xff]
    %v186 = vld [vmem:[#allocation9 + $0x20] sm:$0xff]
    %v187 = vld [vmem:[#allocation9 + $0x28] sm:$0xff]
    %v188 = vld [vmem:[#allocation9 + $0x30] sm:$0xff]
    %v189 = vld [vmem:[#allocation9 + $0x38] sm:$0xff]
    %v191 = vsel %vm128, %v174, 0
    %193 = vmatpush.msra.mxu0 0.0
    %194 = vmatpush.msra.mxu0 0.0
    %195 = vmatpush.msra.mxu0 0.0
    %196 = vmatpush.msra.mxu0 0.0
    %197 = vmatpush.msra.mxu0 0.0
    %198 = vmatpush.msra.mxu0 0.0
    %199 = vmatpush.msra.mxu0 0.0
    %200 = vmatpush.msra.mxu0 0.0
    %201 = vmatpush.msra.mxu0 0.0
    %202 = vmatpush.msra.mxu0 0.0
    %203 = vmatpush.msra.mxu0 0.0
    %204 = vmatpush.msra.mxu0 0.0
    %205 = vmatpush.msra.mxu0 %v188
    %206 = vmatpush.msra.mxu0 %v186
    %207 = vmatpush.msra.mxu0 %v184
    %208 = vmatpush.msra.mxu0 %v182
    %209 = vmatmul.f32.gmra.mxu0 %v191
    %v210 = vpop.f32.mrf.mxu0
    %v211 = vadd.f32 0.0, %v210
    %212 = vdwg.mxu0
    %213 = vmatpush.msra.mxu0 0.0
    %214 = vmatpush.msra.mxu0 0.0
    %215 = vmatpush.msra.mxu0 0.0
    %216 = vmatpush.msra.mxu0 0.0
    %217 = vmatpush.msra.mxu0 0.0
    %218 = vmatpush.msra.mxu0 0.0
    %219 = vmatpush.msra.mxu0 0.0
    %220 = vmatpush.msra.mxu0 0.0
    %221 = vmatpush.msra.mxu0 0.0
    %222 = vmatpush.msra.mxu0 0.0
    %223 = vmatpush.msra.mxu0 0.0
    %224 = vmatpush.msra.mxu0 0.0
    %225 = vmatpush.msra.mxu0 %v189
    %226 = vmatpush.msra.mxu0 %v187
    %227 = vmatpush.msra.mxu0 %v185
    %228 = vmatpush.msra.mxu0 %v183
    %229 = vmatmul.f32.gmra.mxu0 %v191
    %v230 = vpop.f32.mrf.mxu0
    %v231 = vadd.f32 0.0, %v230
    %232 = vdwg.mxu0
    %v233 = vadd.f32 %v180, %v211
    %v234 = vadd.f32 %v181, %v231
    %v235 = vxor.u32 %v233, 2147483648
    %v236 = vxor.u32 %v234, 2147483648
    %v237 = vmul.f32 %v235, 1.442695
    %v238 = vpow.pop %v237
    %v239 = vmul.f32 %v236, 1.442695
    %v240 = vpow.pop %v239
    %v241 = vadd.f32 %v238, 1.0
    %v242 = vadd.f32 %v240, 1.0
    %v243 = vrcp.pop %v241
    %v244 = vmul.f32 %v241, %v243
    %v245 = vsub.f32 1.0, %v244
    %v246 = vmul.f32 %v243, %v245
    %v247 = vadd.f32 %v243, %v246
    %vm248 = vweird.f32 %v241
    %vm249 = vweird.f32 %v243
    %vm250 = vmor %vm248, %vm249
    %v251 = vsel %vm250, %v243, %v247
    %v252 = vand.u32 2147483647, %v241
    %vm253 = vcmp.eq.f32.partialorder %v252, 8.507059e+37
    %v254 = vand.u32 %v241, 2147483648
    %v255 = vor.u32 1.1754944e-38, %v254
    %v256 = vsel %vm253, %v255, %v251
    %v257 = vmul.f32 1.0, %v256
    %v258 = vrcp.pop %v242
    %v259 = vmul.f32 %v242, %v258
    %v260 = vsub.f32 1.0, %v259
    %v261 = vmul.f32 %v258, %v260
    %v262 = vadd.f32 %v258, %v261
    %vm263 = vweird.f32 %v242
    %vm264 = vweird.f32 %v258
    %vm265 = vmor %vm263, %vm264
    %v266 = vsel %vm265, %v258, %v262
    %v267 = vand.u32 2147483647, %v242
    %vm268 = vcmp.eq.f32.partialorder %v267, 8.507059e+37
    %v269 = vand.u32 %v242, 2147483648
    %v270 = vor.u32 1.1754944e-38, %v269
    %v271 = vsel %vm268, %v270, %v266
    %v272 = vmul.f32 1.0, %v271
    %v273 = vtanh.pop %v234
    %v274 = vmax.f32 %v234, 0.0
    %vm275 = vcmp.ne.f32.partialorder %v234, %v234
    %v276 = vadd.f32 %v234, 0.0
    %v277 = vand.u32 2147483647, %v234
    %v278 = vsub.f32 0.0, %v277
    %v279 = vmul.f32 %v278, 1.442695
    %v280 = vpow.pop %v279
    %v281 = vadd.f32 %v280, 1.0
    %v282 = vlog2.pop %v281
    %v283 = vmul.f32 %v282, 0.6931472
    %v284 = vmul.f32 -0.5, %v280
    %v285 = vadd.f32 %v284, 1.0
    %v286 = vmul.f32 %v285, %v280
    %v287 = vand.u32 2147483647, %v280
    %vm288 = vcmp.lt.f32.partialorder %v287, 0.0004427343
    %v289 = vsel %vm288, %v286, %v283
    %v290 = vadd.f32 %v274, %v289
    %v291 = vsel %vm275, %v276, %v290
    %293 = vrot.lane.b32.xlu0 %v175, 64
    %v294 = vpop.permute.xlu0 %293
    %v296 = vmul.f32 %v257, %v294
    %298 = vrot.lane.b32.xlu0 %v273, 96
    %v299 = vpop.permute.xlu0 %298
    %v301 = vmul.f32 %v257, %v299
    %303 = vrot.lane.b32.xlu0 %v301, 64
    %v304 = vpop.permute.xlu0 %303
    %v306 = vadd.f32 %v296, %v304
    %308 = vrot.lane.b32.xlu0 %v176, 96
    %v309 = vpop.permute.xlu0 %308
    %v311 = vmul.f32 %v257, %v309
    %v312 = vmul.f32 %v257, %v273
    %314 = vrot.lane.b32.xlu0 %v312, 64
    %v315 = vpop.permute.xlu0 %314
    %v317 = vadd.f32 %v311, %v315
    %319 = vrot.lane.b32.xlu0 %v306, 64
    %v320 = vpop.permute.xlu0 %319
    %323 = vrot.lane.b32.xlu0 %v317, 64
    %v324 = vpop.permute.xlu0 %323
    %327 = vrot.lane.b32.xlu0 %v272, 96
    %v328 = vpop.permute.xlu0 %327
    %v330 = vsel %vm128, %v320, %v324
    %vm331 = vcmask 523264
    %v332 = vsel %vm331, %v330, %v291
    %vm333 = vcmask 785408
    %v334 = vsel %vm333, %v332, %v328
    %335 = vst [vmem:[#allocation15] sm:$0xff] %v334
    %v336 = vld [vmem:[%s1] sm:$0xff]
    %337 = vrot.lane.b32.xlu0 %v317, 96
    %v338 = vpop.permute.xlu0 %337
    %v340 = vsub.f32 %v306, %v338
    %v341 = vsub.f32 0.0, %v291
    %343 = vset.pattern.permute.xlu0 0
    %344 = vperm.xlu0 %343, %v336
    %v345 = vpop.permute.xlu0 %344
    %v347 = vmul.f32 %v341, %v345
    %v348 = vmul.f32 %v347, 1.442695
    %v349 = vpow.pop %v348
    %v350 = vmul.f32 %v340, %v349
    %352 = vrot.lane.b32.xlu0 %v350, 32
    %v353 = vpop.permute.xlu0 %352
    %v355 = vadd.f32 %v317, %v353
    %v356 = vtanh.pop %v355
    %358 = vrot.lane.b32.xlu0 %v356, 32
    %v359 = vpop.permute.xlu0 %358
    %v361 = vmul.f32 %v272, %v359
    %362 = vst.msk [vmem:[#allocation2] sm:$0xff] %vm128, %v361
    %364 = vrot.lane.b32.xlu0 %v355, 32
    %v365 = vpop.permute.xlu0 %364
    %367 = vst.msk [vmem:[#allocation3] sm:$0xff] %vm128, %v365
    %368 = vrot.lane.b32.xlu0 %v317, 32
    %v369 = vpop.permute.xlu0 %368
    %371 = vst.msk [vmem:[#allocation4] sm:$0xff] %vm128, %v369
    // Predicated region
    $region58: #{tpu_custom_call.1} parent=1 // pred_check
      _
    $region59: #{tpu_custom_call.1} parent=1 // pred_check_branch
      %373 = sbr.rel (0) target = $region61
    $region60: #{tpu_custom_call.1} parent=1 // pred_region
      %375 = vsyncadd [#allocation8], 0
      %s377 = sshll.u32 [#allocation15], 4
      %s378 = int_to_ptr.vmem [resolvable:$true] %s377
      %s379 = sshll.u32 %s8, 4
      %s380 = int_to_ptr.hbm [resolvable:$true] %s379
      %382 = dma.vmem_to_hbm [thread:$0]  %s378, 128, %s380, [#allocation8]
    $region61: #{tpu_custom_call.1} parent=1 // pred_fallthru
      _
    // Predicated region
    $region62: #{tpu_custom_call.1} parent=1 // pred_check
      _
    $region63: #{tpu_custom_call.1} parent=1 // pred_check_branch
      %384 = sbr.rel (0) target = $region65
    $region64: #{tpu_custom_call.1} parent=1 // pred_region
      %386 = dma.done [#allocation8], 128
    $region65: #{tpu_custom_call.1} parent=1 // pred_fallthru
      _
    %387 = vsyncpa [#allocation7], 1
    %388 = vsyncpa [#allocation10], 1
    %389 = vsyncpa [#allocation13], 1
    %390 = vsyncpa [#allocation8], 1

</llo_original>
